<compile_context>
chip_gen: v6e
topology: v6e:2x2x1
jax: 0.10.0
libtpu: 0.0.40
codegen_flags: <defaults>
</compile_context>

<pallas_src>
import functools
import math

import jax
import jax.numpy as jnp
from jax.experimental import pallas as pl
from jax.experimental.pallas import tpu as pltpu


# ----------------------------- Pallas kernel ------------------------------ #
def _ffa_kernel(x_ref, lc_ref, *refs, gather, n_classes, eps):
    """Fused FFA forward for one tile of samples (feature-major, class-major tiles).

    x_ref  : (D-C, TB)  -- label features dropped (they are overwritten anyway);
                           features on sublanes, samples on lanes.
    lc_ref : (H0, TM)   -- constant class-major slab: column c*TB+j = W0[:, c] + b0.
    refs   : (W0_rest, W1, b1, ..., W_{L-1}, b_{L-1}, out_ref); W_l is (H_out, H_in)
             (PyTorch layout), b_l is (H_out, 1); out_ref is (1, TM) lane-dense.
    """
    out_ref = refs[-1]
    wb = refs[:-1]                       # [W0_rest, W1, b1, W2, b2, ...]
    n_layers = (len(wb) + 1) // 2
    C = n_classes

    xr = x_ref[...].astype(jnp.float32)                # (D-C, TB)
    w0r = wb[0][...].astype(jnp.float32)               # (H0, D-C)

    # Layer 0: matmul on the UN-expanded samples, then expand by C lane-contiguous
    # copies (replication commutes with the matmul).  No expansion matrix, no iotas.
    z = jnp.dot(w0r, xr, preferred_element_type=jnp.float32)     # (H0, TB)
    z = jnp.concatenate([z] * C, axis=1)                         # (H0, TM) class-major
    h = jnp.maximum(z + lc_ref[...], 0.0)                        # + label term + bias

    tm = h.shape[1]
    acc = jnp.zeros((1, tm), jnp.float32)

    sq = jnp.sum(h * h, axis=0, keepdims=True)                   # (1, TM) sum of squares
    if gather[0] != 0.0:                                         # gather[0]==0 when L>1
        acc = acc + (gather[0] / float(h.shape[0])) * sq         # goodness = mean(h^2)

    for l in range(1, n_layers):                                 # static unroll
        # F.normalize of previous layer: h / max(||h||, eps) == h * rsqrt(max(sq, eps^2))
        h = h * jax.lax.rsqrt(jnp.maximum(sq, eps * eps))
        w = wb[2 * l - 1][...].astype(jnp.float32)               # (H_out, H_in)
        b = wb[2 * l][...].astype(jnp.float32)                   # (H_out, 1)
        h = jnp.maximum(jnp.dot(w, h, preferred_element_type=jnp.float32) + b, 0.0)
        sq = jnp.sum(h * h, axis=0, keepdims=True)
        if gather[l] != 0.0:
            acc = acc + (gather[l] / float(h.shape[0])) * sq
        # last-layer normalize is dead work -> skipped (loop ends here)

    out_ref[...] = acc


# ------------------------------ JAX glue ----------------------------------- #
def get_all_possible_matches(x, n_classes):
    """Reference (wrapper-side) expansion used only by the pure-JAX reference."""
    B, D = x.shape
    xr = jnp.broadcast_to(x[:, None, :], (B, n_classes, D))
    onehot = jnp.broadcast_to(jnp.eye(n_classes, dtype=x.dtype)[None],
                              (B, n_classes, n_classes))
    xr = xr.at[:, :, :n_classes].set(onehot)
    return xr.reshape(B * n_classes, D)


def ffa_forward(x, params, gather, n_classes):
    """Module.forward: class expansion -> per-layer goodness -> mv(gather) -> (B, C).
    The whole chain runs inside one Pallas kernel, tiled over samples (lane-major)."""
    B, D = x.shape
    C = int(n_classes)
    assert 0 < C < D, (C, D)

    LANE = 128
    # --- tile selection -------------------------------------------------------------
    # Big tiles amortize the ~0.35us per-grid-step overhead (target ~2048 expanded
    # lanes / step), but keep >= 2 tiles whenever the batch allows so the "parallel"
    # axis shards across both v7x TensorCores.  tb stays a multiple of 128 so class
    # blocks are lane-aligned and stores are unmasked.
    b_pad = ((B + LANE - 1) // LANE) * LANE
    tb_target = max(LANE, (2048 // C) // LANE * LANE)
    min_tiles = 2 if b_pad >= 2 * LANE else 1
    tb = max(LANE, min(tb_target, b_pad // min_tiles) // LANE * LANE)
    b_pad = ((b_pad + tb - 1) // tb) * tb
    num_tiles = b_pad // tb
    tm = tb * C
    r_pad = b_pad * C

    w0, b0 = params[0]
    H0 = w0.shape[0]

    # Feature-major input with the first C (label) features dropped -- they are
    # overwritten by the one-hot and never used.  Zero-pad samples (sliced off below).
    x_rest_t = x[:, C:].T.astype(jnp.float32)                    # (D-C, B)
    if b_pad != B:
        x_rest_t = jnp.pad(x_rest_t, ((0, 0), (0, b_pad - B)))

    # Hoisted constant: class-major layer-0 label contribution + bias.
    # Column c*tb + j of the slab is W0[:, c] + b0 (one-hot column c hits W0[:, c]).
    lc = (w0[:, :C] + b0[:, None]).astype(jnp.float32)           # (H0, C)
    label_contrib = jnp.repeat(lc, tb, axis=1)                   # (H0, tm)

    w0_rest = w0[:, C:].astype(jnp.float32)                      # (H0, D-C)

    flat = [x_rest_t, label_contrib, w0_rest]
    in_specs = [
        pl.BlockSpec((D - C, tb), lambda i: (0, i)),             # per-tile samples
        pl.BlockSpec((H0, tm), lambda i: (0, 0)),                # constant, DMA'd once
        pl.BlockSpec((H0, D - C), lambda i: (0, 0)),             # constant, DMA'd once
    ]
    # Remaining weights/biases fully VMEM-resident (tiny here; see v7x note at top).
    for (w, b) in params[1:]:
        flat.append(w.astype(jnp.float32))
        flat.append(b.reshape(-1, 1).astype(jnp.float32))
        in_specs.append(pl.BlockSpec(w.shape, lambda i: (0, 0)))
        in_specs.append(pl.BlockSpec((b.size, 1), lambda i: (0, 0)))

    kernel = functools.partial(
        _ffa_kernel,
        gather=tuple(float(g) for g in gather),
        n_classes=C,
        eps=1e-12,
    )

    out = pl.pallas_call(
        kernel,
        out_shape=jax.ShapeDtypeStruct((1, r_pad), jnp.float32),  # lane-dense output
        grid=(num_tiles,),
        in_specs=in_specs,
        out_specs=pl.BlockSpec((1, tm), lambda i: (0, i)),
        compiler_params=pltpu.CompilerParams(dimension_semantics=("parallel",)),
    )(*flat)

    # Wrapper-side layout plumbing: class-major tiles -> (sample, class), drop padding.
    out = out.reshape(num_tiles, C, tb).transpose(0, 2, 1).reshape(b_pad, C)
    return out[:B]


def ffa_forward_ref(x, params, gather, n_classes, eps=1e-12):
    """Pure-JAX reference of the same forward pass (PyTorch semantics)."""
    h = get_all_possible_matches(x, n_classes).astype(jnp.float32)
    goods = []
    for (w, b) in params:                                # PyTorch Linear layout (out, in)
        h = jnp.maximum(h @ w.T + b, 0.0)
        goods.append(jnp.mean(h * h, axis=1, keepdims=True))
        h = h / jnp.maximum(jnp.linalg.norm(h, axis=1, keepdims=True), eps)
    g = jnp.concatenate(goods, axis=1)                   # (R, L)
    return (g @ gather).reshape(-1, n_classes)


def init_params(key, dims):
    """PyTorch-Linear-style init: U(-1/sqrt(fan_in), 1/sqrt(fan_in)), weight (out, in)."""
    params = []
    for d_in, d_out in zip(dims[:-1], dims[1:]):
        key, kw, kb = jax.random.split(key, 3)
        bound = 1.0 / math.sqrt(d_in)
        w = jax.random.uniform(kw, (d_out, d_in), jnp.float32, -bound, bound)
        b = jax.random.uniform(kb, (d_out,), jnp.float32, -bound, bound)
        params.append((w, b))
    return params


# ------------------------------- main -------------------------------------- #
if __name__ == "__main__":
    hyp = {"n_classes": 2, "dims": [32, 32, 32, 32]}     # 3 FC layers, D=H=32
    n_classes = hyp["n_classes"]
    dims = hyp["dims"]
    n_layers = len(dims) - 1

    # gather buffer: ones(L), gather[0] = 0 if L > 1
    gather = jnp.ones((n_layers,), jnp.float32)
    if n_layers > 1:
        gather = gather.at[0].set(0.0)

    key = jax.random.PRNGKey(0)
    key, kx1, kx2 = jax.random.split(key, 3)
    params = init_params(key, dims)

    # TPU MXU matmuls at default precision round operands to bf16; additionally the
    # kernel adds the (exact f32) one-hot label column of W0 outside the MXU while the
    # XLA reference routes it through the dot, so a slightly looser rtol is needed.
    RTOL, ATOL = 1e-2, 1e-4

    # Case 1: tiny batch (single tile, padded to 128 samples -> 256 expanded lanes).
    B1 = 4
    x1 = jax.random.normal(kx1, (B1, dims[0]), jnp.float32)
    out1 = jax.block_until_ready(ffa_forward(x1, params, gather, n_classes))
    ref1 = ffa_forward_ref(x1, params, gather, n_classes)
    assert out1.shape == (B1, n_classes), out1.shape
    assert jnp.allclose(out1, ref1, rtol=RTOL, atol=ATOL), (out1, ref1)

    # Case 2: larger batch (sample padding, 2-tile "parallel" grid -> both v7x cores).
    B2 = 200
    x2 = jax.random.normal(kx2, (B2, dims[0]), jnp.float32)
    out2 = jax.block_until_ready(ffa_forward(x2, params, gather, n_classes))
    ref2 = ffa_forward_ref(x2, params, gather, n_classes)
    assert out2.shape == (B2, n_classes), out2.shape
    assert jnp.allclose(out2, ref2, rtol=RTOL, atol=ATOL), (out2, ref2)

    print("KERNEL_OK")
</pallas_src>

<mosaic_0001>
module attributes {stable_mosaic.version = 11 : i64} {
  func.func @_ffa_kernel(%arg0: i32, %arg1: memref<30x128xf32, #tpu.memory_space<vmem>>, %arg2: memref<32x256xf32, #tpu.memory_space<vmem>>, %arg3: memref<32x30xf32, #tpu.memory_space<vmem>>, %arg4: memref<32x32xf32, #tpu.memory_space<vmem>>, %arg5: memref<32x1xf32, #tpu.memory_space<vmem>>, %arg6: memref<32x32xf32, #tpu.memory_space<vmem>>, %arg7: memref<32x1xf32, #tpu.memory_space<vmem>>, %arg8: memref<1x256xf32, #tpu.memory_space<vmem>>) attributes {dimension_semantics = [#tpu.dimension_semantics<parallel>], iteration_bounds = array<i64: 1>, scalar_prefetch = 0 : i64, scratch_operands = 0 : i64, tpu.core_type = #tpu.core_type<tc>, window_params = [{transform_indices = @transform_0, window_bounds = array<i64: 30, 128>}, {pipeline_mode = #tpu.pipeline_mode<synchronous>, transform_indices = @transform_1, window_bounds = array<i64: 32, 256>}, {pipeline_mode = #tpu.pipeline_mode<synchronous>, transform_indices = @transform_2, window_bounds = array<i64: 32, 30>}, {pipeline_mode = #tpu.pipeline_mode<synchronous>, transform_indices = @transform_3, window_bounds = array<i64: 32, 32>}, {pipeline_mode = #tpu.pipeline_mode<synchronous>, transform_indices = @transform_4, window_bounds = array<i64: 32, 1>}, {pipeline_mode = #tpu.pipeline_mode<synchronous>, transform_indices = @transform_5, window_bounds = array<i64: 32, 32>}, {pipeline_mode = #tpu.pipeline_mode<synchronous>, transform_indices = @transform_6, window_bounds = array<i64: 32, 1>}, {transform_indices = @transform_7, window_bounds = array<i64: 1, 256>}]} {
    %c0 = arith.constant 0 : index
    %c0_0 = arith.constant 0 : index
    %0 = vector.load %arg1[%c0, %c0_0] : memref<30x128xf32, #tpu.memory_space<vmem>>, vector<30x128xf32>
    %c0_1 = arith.constant 0 : index
    %c0_2 = arith.constant 0 : index
    %1 = vector.load %arg3[%c0_1, %c0_2] : memref<32x30xf32, #tpu.memory_space<vmem>>, vector<32x30xf32>
    %cst = arith.constant dense<0.000000e+00> : vector<32x128xf32>
    %2 = tpu.matmul %1, %0, %cst {dimension_numbers = #tpu.dot_dimension_numbers<[1], [0], [0], [1], [0, 0, 1, 1], [], []>} : vector<32x30xf32>, vector<30x128xf32>, vector<32x128xf32> -> vector<32x128xf32>
    %3 = tpu.concatenate %2, %2 in 1 : vector<32x128xf32>, vector<32x128xf32> -> vector<32x256xf32>
    %c0_3 = arith.constant 0 : index
    %c0_4 = arith.constant 0 : index
    %4 = vector.load %arg2[%c0_3, %c0_4] : memref<32x256xf32, #tpu.memory_space<vmem>>, vector<32x256xf32>
    %5 = arith.addf %3, %4 : vector<32x256xf32>
    %cst_5 = arith.constant 0.000000e+00 : f32
    %6 = vector.broadcast %cst_5 : f32 to vector<32x256xf32>
    %7 = arith.maximumf %5, %6 : vector<32x256xf32>
    %cst_6 = arith.constant 0.000000e+00 : f32
    %8 = vector.broadcast %cst_6 : f32 to vector<1x256xf32>
    %9 = arith.mulf %7, %7 : vector<32x256xf32>
    %cst_7 = arith.constant dense<0.000000e+00> : vector<256xf32>
    %10 = vector.multi_reduction <add>, %9, %cst_7 [0] : vector<32x256xf32> to vector<256xf32>
    %11 = vector.shape_cast %10 : vector<256xf32> to vector<1x256xf32>
    %cst_8 = arith.constant 1.000000e-24 : f32
    %12 = vector.broadcast %cst_8 : f32 to vector<1x256xf32>
    %13 = arith.maximumf %11, %12 : vector<1x256xf32>
    %14 = math.rsqrt %13 : vector<1x256xf32>
    %15 = vector.broadcast %14 : vector<1x256xf32> to vector<32x256xf32>
    %16 = arith.mulf %7, %15 : vector<32x256xf32>
    %c0_9 = arith.constant 0 : index
    %c0_10 = arith.constant 0 : index
    %17 = vector.load %arg4[%c0_9, %c0_10] : memref<32x32xf32, #tpu.memory_space<vmem>>, vector<32x32xf32>
    %c0_11 = arith.constant 0 : index
    %c0_12 = arith.constant 0 : index
    %18 = vector.load %arg5[%c0_11, %c0_12] : memref<32x1xf32, #tpu.memory_space<vmem>>, vector<32x1xf32>
    %cst_13 = arith.constant dense<0.000000e+00> : vector<32x256xf32>
    %19 = tpu.matmul %17, %16, %cst_13 {dimension_numbers = #tpu.dot_dimension_numbers<[1], [0], [0], [1], [0, 0, 1, 1], [], []>} : vector<32x32xf32>, vector<32x256xf32>, vector<32x256xf32> -> vector<32x256xf32>
    %20 = vector.broadcast %18 : vector<32x1xf32> to vector<32x256xf32>
    %21 = arith.addf %19, %20 : vector<32x256xf32>
    %cst_14 = arith.constant 0.000000e+00 : f32
    %22 = vector.broadcast %cst_14 : f32 to vector<32x256xf32>
    %23 = arith.maximumf %21, %22 : vector<32x256xf32>
    %24 = arith.mulf %23, %23 : vector<32x256xf32>
    %cst_15 = arith.constant dense<0.000000e+00> : vector<256xf32>
    %25 = vector.multi_reduction <add>, %24, %cst_15 [0] : vector<32x256xf32> to vector<256xf32>
    %26 = vector.shape_cast %25 : vector<256xf32> to vector<1x256xf32>
    %cst_16 = arith.constant 3.125000e-02 : f32
    %27 = vector.broadcast %cst_16 : f32 to vector<1x256xf32>
    %28 = arith.mulf %27, %26 : vector<1x256xf32>
    %29 = arith.addf %8, %28 : vector<1x256xf32>
    %cst_17 = arith.constant 1.000000e-24 : f32
    %30 = vector.broadcast %cst_17 : f32 to vector<1x256xf32>
    %31 = arith.maximumf %26, %30 : vector<1x256xf32>
    %32 = math.rsqrt %31 : vector<1x256xf32>
    %33 = vector.broadcast %32 : vector<1x256xf32> to vector<32x256xf32>
    %34 = arith.mulf %23, %33 : vector<32x256xf32>
    %c0_18 = arith.constant 0 : index
    %c0_19 = arith.constant 0 : index
    %35 = vector.load %arg6[%c0_18, %c0_19] : memref<32x32xf32, #tpu.memory_space<vmem>>, vector<32x32xf32>
    %c0_20 = arith.constant 0 : index
    %c0_21 = arith.constant 0 : index
    %36 = vector.load %arg7[%c0_20, %c0_21] : memref<32x1xf32, #tpu.memory_space<vmem>>, vector<32x1xf32>
    %cst_22 = arith.constant dense<0.000000e+00> : vector<32x256xf32>
    %37 = tpu.matmul %35, %34, %cst_22 {dimension_numbers = #tpu.dot_dimension_numbers<[1], [0], [0], [1], [0, 0, 1, 1], [], []>} : vector<32x32xf32>, vector<32x256xf32>, vector<32x256xf32> -> vector<32x256xf32>
    %38 = vector.broadcast %36 : vector<32x1xf32> to vector<32x256xf32>
    %39 = arith.addf %37, %38 : vector<32x256xf32>
    %cst_23 = arith.constant 0.000000e+00 : f32
    %40 = vector.broadcast %cst_23 : f32 to vector<32x256xf32>
    %41 = arith.maximumf %39, %40 : vector<32x256xf32>
    %42 = arith.mulf %41, %41 : vector<32x256xf32>
    %cst_24 = arith.constant dense<0.000000e+00> : vector<256xf32>
    %43 = vector.multi_reduction <add>, %42, %cst_24 [0] : vector<32x256xf32> to vector<256xf32>
    %44 = vector.shape_cast %43 : vector<256xf32> to vector<1x256xf32>
    %cst_25 = arith.constant 3.125000e-02 : f32
    %45 = vector.broadcast %cst_25 : f32 to vector<1x256xf32>
    %46 = arith.mulf %45, %44 : vector<1x256xf32>
    %47 = arith.addf %29, %46 : vector<1x256xf32>
    %c0_26 = arith.constant 0 : index
    %c0_27 = arith.constant 0 : index
    %48 = vector.load %arg8[%c0_26, %c0_27] : memref<1x256xf32, #tpu.memory_space<vmem>>, vector<1x256xf32>
    tpu.vector_store %arg8[%c0_26, %c0_27], %47 {strides = array<i32>} : memref<1x256xf32, #tpu.memory_space<vmem>>, vector<1x256xf32>,
    return
  }
  func.func @transform_0(%arg0: i32) -> (i32, i32) {
    %c0_i32 = arith.constant 0 : i32
    %c0_i32_0 = arith.constant 0 : i32
    return %c0_i32, %arg0 : i32, i32
  }
  func.func @transform_1(%arg0: i32) -> (i32, i32) {
    %c0_i32 = arith.constant 0 : i32
    %c0_i32_0 = arith.constant 0 : i32
    %c0_i32_1 = arith.constant 0 : i32
    return %c0_i32, %c0_i32_0 : i32, i32
  }
  func.func @transform_2(%arg0: i32) -> (i32, i32) {
    %c0_i32 = arith.constant 0 : i32
    %c0_i32_0 = arith.constant 0 : i32
    %c0_i32_1 = arith.constant 0 : i32
    return %c0_i32, %c0_i32_0 : i32, i32
  }
  func.func @transform_3(%arg0: i32) -> (i32, i32) {
    %c0_i32 = arith.constant 0 : i32
    %c0_i32_0 = arith.constant 0 : i32
    %c0_i32_1 = arith.constant 0 : i32
    return %c0_i32, %c0_i32_0 : i32, i32
  }
  func.func @transform_4(%arg0: i32) -> (i32, i32) {
    %c0_i32 = arith.constant 0 : i32
    %c0_i32_0 = arith.constant 0 : i32
    %c0_i32_1 = arith.constant 0 : i32
    return %c0_i32, %c0_i32_0 : i32, i32
  }
  func.func @transform_5(%arg0: i32) -> (i32, i32) {
    %c0_i32 = arith.constant 0 : i32
    %c0_i32_0 = arith.constant 0 : i32
    %c0_i32_1 = arith.constant 0 : i32
    return %c0_i32, %c0_i32_0 : i32, i32
  }
  func.func @transform_6(%arg0: i32) -> (i32, i32) {
    %c0_i32 = arith.constant 0 : i32
    %c0_i32_0 = arith.constant 0 : i32
    %c0_i32_1 = arith.constant 0 : i32
    return %c0_i32, %c0_i32_0 : i32, i32
  }
  func.func @transform_7(%arg0: i32) -> (i32, i32) {
    %c0_i32 = arith.constant 0 : i32
    %c0_i32_0 = arith.constant 0 : i32
    return %c0_i32, %arg0 : i32, i32
  }
}

</mosaic_0001>

<llo_original>
// kernel: tpu_custom_call.1
$region0: #{tpu_custom_call.1}
  #allocation0 [shape = 'u32[]', space=smem, size = 0x4, offset = 0x4, fixed_abs, tag = 'smem constant byte address 0x4 - core index']
  #allocation1 [shape = 'u32[144,128]{1,0:T(1,128)}', space=vmem, size = 0x12000, scoped, tag = 'internal scratch']
  %s0 = inlined_call_operand.hbm [shape: f32[30,128], index: 0, kind: input, shape index: {}]
  %s1 = inlined_call_operand.vmem [shape: f32[32,256], index: 1, kind: input, shape index: {}]
  %s2 = inlined_call_operand.hbm [shape: f32[32,30], index: 2, kind: input, shape index: {}]
  %s3 = inlined_call_operand.hbm [shape: f32[32,32], index: 3, kind: input, shape index: {}]
  %s4 = inlined_call_operand.vmem [shape: f32[32,1], index: 4, kind: input, shape index: {}]
  %s5 = inlined_call_operand.hbm [shape: f32[32,32], index: 5, kind: input, shape index: {}]
  %s6 = inlined_call_operand.vmem [shape: f32[32,1], index: 6, kind: input, shape index: {}]
  %s7 = inlined_call_operand.hbm [shape: f32[1,256], index: 7, kind: output, shape index: {}]
  %s8 = sld [smem:[#allocation0]]
  $region54: #{tpu_custom_call.1} parent=0
    _
  %s10 = ssub.s32 1, %s8
  %s11 = scalar_select 0, %s10, %s8
  $region1: #{tpu_custom_call.1} parent=0
    #allocation2 [shape = 'u8[16384]{0}', space=vmem, size = 0x4000, scoped, tag = 'input window, operand 0, single buffered']
    #allocation3 [shape = 's32[1]{0}', space=sflag, size = 0x4, scoped, tag = 'scoped memory for tpu_custom_call.1']
    #allocation4 [shape = 's32[1]{0}', space=sflag, size = 0x4, scoped, tag = 'scoped memory for tpu_custom_call.1']
    #allocation5 [shape = 'u8[16384]{0}', space=vmem, size = 0x4000, scoped, tag = 'input window, operand 2, single buffered']
    #allocation6 [shape = 's32[1]{0}', space=sflag, size = 0x4, scoped, tag = 'scoped memory for tpu_custom_call.1']
    #allocation7 [shape = 'u8[16384]{0}', space=vmem, size = 0x4000, scoped, tag = 'input window, operand 3, single buffered']
    #allocation8 [shape = 'u8[16384]{0}', space=vmem, size = 0x4000, scoped, tag = 'input window, operand 5, single buffered']
    #allocation9 [shape = 's32[1]{0}', space=sflag, size = 0x4, scoped, tag = 'scoped memory for tpu_custom_call.1']
    #allocation10 [shape = 'u8[1024]{0}', space=vmem, size = 0x400, scoped, tag = 'output window, operand 0, single buffered']
    %12 = vsyncpa [#allocation3], 0
    %13 = vsyncpa [#allocation6], 0
    %14 = vsyncpa [#allocation9], 0
    %15 = vsyncpa [#allocation4], 0
    // Predicated region
    $region2: #{tpu_custom_call.1} parent=1 // pred_check
      _
    $region3: #{tpu_custom_call.1} parent=1 // pred_check_branch
      %17 = sbr.rel (0) target = $region5
    $region4: #{tpu_custom_call.1} parent=1 // pred_region
      %s19 = ssub.s32 512, 512
      %20 = vsyncadd [#allocation3], %s19
      %s21 = sshll.u32 [#allocation2], 4
      %s22 = int_to_ptr.vmem [resolvable:$true] %s21
      %27 = dma.hbm_to_vmem [thread:$0]  %s0, 512, %s22, [#allocation3], 128, 128, 8
    $region5: #{tpu_custom_call.1} parent=1 // pred_fallthru
      _
    // Predicated region
    $region6: #{tpu_custom_call.1} parent=1 // pred_check
      _
    $region7: #{tpu_custom_call.1} parent=1 // pred_check_branch
      %29 = sbr.rel (0) target = $region9
    $region8: #{tpu_custom_call.1} parent=1 // pred_region
      _
    $region9: #{tpu_custom_call.1} parent=1 // pred_fallthru
      _
    // Predicated region
    $region10: #{tpu_custom_call.1} parent=1 // pred_check
      _
    $region11: #{tpu_custom_call.1} parent=1 // pred_check_branch
      %31 = sbr.rel (0) target = $region13
    $region12: #{tpu_custom_call.1} parent=1 // pred_region
      %s33 = ssub.s32 512, 512
      %34 = vsyncadd [#allocation6], %s33
      %s35 = sshll.u32 [#allocation5], 4
      %s36 = int_to_ptr.vmem [resolvable:$true] %s35
      %41 = dma.hbm_to_vmem [thread:$0]  %s2, 512, %s36, [#allocation6], 128, 128, 8
    $region13: #{tpu_custom_call.1} parent=1 // pred_fallthru
      _
    // Predicated region
    $region14: #{tpu_custom_call.1} parent=1 // pred_check
      _
    $region15: #{tpu_custom_call.1} parent=1 // pred_check_branch
      %43 = sbr.rel (0) target = $region17
    $region16: #{tpu_custom_call.1} parent=1 // pred_region
      %s45 = ssub.s32 512, 512
      %46 = vsyncadd [#allocation6], %s45
      %s47 = sshll.u32 [#allocation7], 4
      %s48 = int_to_ptr.vmem [resolvable:$true] %s47
      %53 = dma.hbm_to_vmem [thread:$0]  %s3, 512, %s48, [#allocation6], 128, 128, 8
    $region17: #{tpu_custom_call.1} parent=1 // pred_fallthru
      _
    // Predicated region
    $region18: #{tpu_custom_call.1} parent=1 // pred_check
      _
    $region19: #{tpu_custom_call.1} parent=1 // pred_check_branch
      %55 = sbr.rel (0) target = $region21
    $region20: #{tpu_custom_call.1} parent=1 // pred_region
      _
    $region21: #{tpu_custom_call.1} parent=1 // pred_fallthru
      _
    // Predicated region
    $region22: #{tpu_custom_call.1} parent=1 // pred_check
      _
    $region23: #{tpu_custom_call.1} parent=1 // pred_check_branch
      %57 = sbr.rel (0) target = $region25
    $region24: #{tpu_custom_call.1} parent=1 // pred_region
      %s59 = ssub.s32 512, 512
      %60 = vsyncadd [#allocation9], %s59
      %s61 = sshll.u32 [#allocation8], 4
      %s62 = int_to_ptr.vmem [resolvable:$true] %s61
      %67 = dma.hbm_to_vmem [thread:$0]  %s5, 512, %s62, [#allocation9], 128, 128, 8
    $region25: #{tpu_custom_call.1} parent=1 // pred_fallthru
      _
    // Predicated region
    $region26: #{tpu_custom_call.1} parent=1 // pred_check
      _
    $region27: #{tpu_custom_call.1} parent=1 // pred_check_branch
      %69 = sbr.rel (0) target = $region29
    $region28: #{tpu_custom_call.1} parent=1 // pred_region
      _
    $region29: #{tpu_custom_call.1} parent=1 // pred_fallthru
      _
    // Predicated region
    $region30: #{tpu_custom_call.1} parent=1 // pred_check
      _
    $region31: #{tpu_custom_call.1} parent=1 // pred_check_branch
      %71 = sbr.rel (0) target = $region33
    $region32: #{tpu_custom_call.1} parent=1 // pred_region
      %72 = dma.done [#allocation3], 512
    $region33: #{tpu_custom_call.1} parent=1 // pred_fallthru
      _
    // Predicated region
    $region34: #{tpu_custom_call.1} parent=1 // pred_check
      _
    $region35: #{tpu_custom_call.1} parent=1 // pred_check_branch
      %74 = sbr.rel (0) target = $region37
    $region36: #{tpu_custom_call.1} parent=1 // pred_region
      %75 = dma.done [#allocation6], 512
    $region37: #{tpu_custom_call.1} parent=1 // pred_fallthru
      _
    // Predicated region
    $region38: #{tpu_custom_call.1} parent=1 // pred_check
      _
    $region39: #{tpu_custom_call.1} parent=1 // pred_check_branch
      %77 = sbr.rel (0) target = $region41
    $region40: #{tpu_custom_call.1} parent=1 // pred_region
      %78 = dma.done [#allocation6], 512
    $region41: #{tpu_custom_call.1} parent=1 // pred_fallthru
      _
    // Predicated region
    $region42: #{tpu_custom_call.1} parent=1 // pred_check
      _
    $region43: #{tpu_custom_call.1} parent=1 // pred_check_branch
      %80 = sbr.rel (0) target = $region45
    $region44: #{tpu_custom_call.1} parent=1 // pred_region
      %81 = dma.done [#allocation9], 512
    $region45: #{tpu_custom_call.1} parent=1 // pred_fallthru
      _
    %v82 = vld [vmem:[#allocation2] sm:$0xff]
    %v83 = vld [vmem:[#allocation2 + $0x8] sm:$0xff]
    %v84 = vld [vmem:[#allocation2 + $0x10] sm:$0xff]
    %v85 = vld [vmem:[#allocation2 + $0x18] sm:$0x3f]
    %v86 = vld [vmem:[#allocation5] sm:$0xff]
    %v87 = vld [vmem:[#allocation5 + $0x8] sm:$0xff]
    %v88 = vld [vmem:[#allocation5 + $0x10] sm:$0xff]
    %v89 = vld [vmem:[#allocation5 + $0x18] sm:$0xff]
    %vm90 = vcmask 244736
    %v92 = vsel %vm90, %v86, 0
    %v95 = vsel %vm90, %v87, 0
    %v98 = vsel %vm90, %v88, 0
    %v101 = vsel %vm90, %v89, 0
    %vm103 = vcmask 1045504
    %v105 = vsel %vm103, %v85, 0
    %107 = vmatprep.subr.mxu0 0.0
    %108 = vmatpush1.msra.mxu0 0.0
    %109 = vmatprep.subr.mxu0 0.0
    %110 = vmatpush1.msra.mxu0 0.0
    %111 = vmatprep.subr.mxu0 0.0
    %112 = vmatpush1.msra.mxu0 0.0
    %113 = vmatprep.subr.mxu0 0.0
    %114 = vmatpush1.msra.mxu0 0.0
    %115 = vmatprep.subr.mxu0 0.0
    %116 = vmatpush1.msra.mxu0 0.0
    %117 = vmatprep.subr.mxu0 0.0
    %118 = vmatpush1.msra.mxu0 0.0
    %119 = vmatprep.subr.mxu0 0.0
    %120 = vmatpush1.msra.mxu0 0.0
    %121 = vmatprep.subr.mxu0 0.0
    %122 = vmatpush1.msra.mxu0 0.0
    %123 = vmatprep.subr.mxu0 0.0
    %124 = vmatpush1.msra.mxu0 0.0
    %125 = vmatprep.subr.mxu0 0.0
    %126 = vmatpush1.msra.mxu0 0.0
    %127 = vmatprep.subr.mxu0 0.0
    %128 = vmatpush1.msra.mxu0 0.0
    %129 = vmatprep.subr.mxu0 0.0
    %130 = vmatpush1.msra.mxu0 0.0
    %131 = vmatprep.subr.mxu0 0.0
    %132 = vmatpush1.msra.mxu0 %v105
    %133 = vmatprep.subr.mxu0 0.0
    %134 = vmatpush1.msra.mxu0 %v84
    %135 = vmatprep.subr.mxu0 0.0
    %136 = vmatpush1.msra.mxu0 %v83
    %137 = vmatprep.subr.mxu0 0.0
    %138 = vmatpush1.msra.mxu0 %v82
    %139 = vmatprep.subr.mxu0 0.0
    %140 = vmatpush2.msra.mxu0 0.0
    %141 = vmatprep.subr.mxu0 0.0
    %142 = vmatpush2.msra.mxu0 0.0
    %143 = vmatprep.subr.mxu0 0.0
    %144 = vmatpush2.msra.mxu0 0.0
    %145 = vmatprep.subr.mxu0 0.0
    %146 = vmatpush2.msra.mxu0 0.0
    %147 = vmatprep.subr.mxu0 0.0
    %148 = vmatpush2.msra.mxu0 0.0
    %149 = vmatprep.subr.mxu0 0.0
    %150 = vmatpush2.msra.mxu0 0.0
    %151 = vmatprep.subr.mxu0 0.0
    %152 = vmatpush2.msra.mxu0 0.0
    %153 = vmatprep.subr.mxu0 0.0
    %154 = vmatpush2.msra.mxu0 0.0
    %155 = vmatprep.subr.mxu0 0.0
    %156 = vmatpush2.msra.mxu0 0.0
    %157 = vmatprep.subr.mxu0 0.0
    %158 = vmatpush2.msra.mxu0 0.0
    %159 = vmatprep.subr.mxu0 0.0
    %160 = vmatpush2.msra.mxu0 0.0
    %161 = vmatprep.subr.mxu0 0.0
    %162 = vmatpush2.msra.mxu0 0.0
    %163 = vmatprep.subr.mxu0 0.0
    %164 = vmatpush2.msra.mxu0 0.0
    %165 = vmatprep.subr.mxu0 0.0
    %166 = vmatpush2.msra.mxu0 0.0
    %167 = vmatprep.subr.mxu0 0.0
    %168 = vmatpush2.msra.mxu0 0.0
    %169 = vmatprep.subr.mxu0 0.0
    %170 = vmatpush2.msra.mxu0 0.0
    %171 = vmatprep.mubr.f32.mxu0 0.0
    %172 = vmatmul.mubr.f32.gmra.mxu0 %v92
    %v173 = vpop.f32.mrf.mxu0
    %v174 = vadd.f32 0.0, %v173
    %v175 = vpop.f32.mrf.mxu0
    %176 = vmatprep.mubr.f32.mxu0 0.0
    %177 = vmatmul.mubr.f32.gmra.mxu0 %v95
    %v178 = vpop.f32.mrf.mxu0
    %v179 = vadd.f32 0.0, %v178
    %v180 = vpop.f32.mrf.mxu0
    %181 = vmatprep.mubr.f32.mxu0 0.0
    %182 = vmatmul.mubr.f32.gmra.mxu0 %v98
    %v183 = vpop.f32.mrf.mxu0
    %v184 = vadd.f32 0.0, %v183
    %v185 = vpop.f32.mrf.mxu0
    %186 = vmatprep.mubr.f32.mxu0 0.0
    %187 = vmatmul.mubr.f32.gmra.mxu0 %v101
    %v188 = vpop.f32.mrf.mxu0
    %v189 = vadd.f32 0.0, %v188
    %v190 = vpop.f32.mrf.mxu0
    %191 = vdwg.mxu0
    %v192 = vld [vmem:[%s1] sm:$0xff]
    %v193 = vld [vmem:[%s1 + $0x8] sm:$0xff]
    %v194 = vld [vmem:[%s1 + $0x10] sm:$0xff]
    %v195 = vld [vmem:[%s1 + $0x18] sm:$0xff]
    %v196 = vld [vmem:[%s1 + $0x20] sm:$0xff]
    %v197 = vld [vmem:[%s1 + $0x28] sm:$0xff]
    %v198 = vld [vmem:[%s1 + $0x30] sm:$0xff]
    %v199 = vld [vmem:[%s1 + $0x38] sm:$0xff]
    %v200 = vadd.f32 %v174, %v192
    %v201 = vadd.f32 %v174, %v193
    %v202 = vadd.f32 %v179, %v194
    %v203 = vadd.f32 %v179, %v195
    %v204 = vadd.f32 %v184, %v196
    %v205 = vadd.f32 %v184, %v197
    %v206 = vadd.f32 %v189, %v198
    %v207 = vadd.f32 %v189, %v199
    %v208 = vmax.f32 %v200, 0.0
    %v209 = vmax.f32 %v201, 0.0
    %v210 = vmax.f32 %v202, 0.0
    %v211 = vmax.f32 %v203, 0.0
    %v212 = vmax.f32 %v204, 0.0
    %v213 = vmax.f32 %v205, 0.0
    %v214 = vmax.f32 %v206, 0.0
    %v215 = vmax.f32 %v207, 0.0
    %v216 = vmul.f32 %v208, %v208
    %v217 = vmul.f32 %v209, %v209
    %v218 = vmul.f32 %v210, %v210
    %v219 = vmul.f32 %v211, %v211
    %v220 = vmul.f32 %v212, %v212
    %v221 = vmul.f32 %v213, %v213
    %v222 = vmul.f32 %v214, %v214
    %v223 = vmul.f32 %v215, %v215
    %v224 = vadd.f32 %v216, %v218
    %v225 = vadd.f32 %v224, %v220
    %v226 = vadd.f32 %v225, %v222
    %v227 = vrot.slane %v226, 4
    %v228 = vadd.f32 %v226, %v227
    %v229 = vrot.slane %v228, 2
    %v230 = vadd.f32 %v228, %v229
    %v231 = vrot.slane %v230, 1
    %v232 = vadd.f32 %v230, %v231
    %v233 = vadd.f32 %v217, %v219
    %v234 = vadd.f32 %v233, %v221
    %v235 = vadd.f32 %v234, %v223
    %v236 = vrot.slane %v235, 4
    %v237 = vadd.f32 %v235, %v236
    %v238 = vrot.slane %v237, 2
    %v239 = vadd.f32 %v237, %v238
    %v240 = vrot.slane %v239, 1
    %v241 = vadd.f32 %v239, %v240
    %v242 = vmax.f32 %v232, 1e-24
    %v243 = vmax.f32 %v241, 1e-24
    %v244 = vrsqrt.pop %v242
    %v245 = vrsqrt.pop %v243
    %v246 = vmul.f32 %v208, %v244
    %v247 = vmul.f32 %v209, %v245
    %v248 = vmul.f32 %v210, %v244
    %v249 = vmul.f32 %v211, %v245
    %v250 = vmul.f32 %v212, %v244
    %v251 = vmul.f32 %v213, %v245
    %v252 = vmul.f32 %v214, %v244
    %v253 = vmul.f32 %v215, %v245
    %v254 = vld [vmem:[#allocation7] sm:$0xff]
    %v255 = vld [vmem:[#allocation7 + $0x8] sm:$0xff]
    %v256 = vld [vmem:[#allocation7 + $0x10] sm:$0xff]
    %v257 = vld [vmem:[#allocation7 + $0x18] sm:$0xff]
    %v258 = vld [vmem:[%s4] sm:$0xff]
    %v259 = vld [vmem:[%s4 + $0x8] sm:$0xff]
    %v260 = vld [vmem:[%s4 + $0x10] sm:$0xff]
    %v261 = vld [vmem:[%s4 + $0x18] sm:$0xff]
    %263 = vset.pattern.permute.xlu0 0
    %264 = vperm.xlu0 %263, %v258
    %v265 = vpop.permute.xlu0 %264
    %268 = vset.pattern.permute.xlu0 0
    %269 = vperm.xlu0 %268, %v259
    %v270 = vpop.permute.xlu0 %269
    %273 = vset.pattern.permute.xlu0 0
    %274 = vperm.xlu0 %273, %v260
    %v275 = vpop.permute.xlu0 %274
    %278 = vset.pattern.permute.xlu0 0
    %279 = vperm.xlu0 %278, %v261
    %v280 = vpop.permute.xlu0 %279
    %vm282 = vcmask 261120
    %v284 = vsel %vm282, %v254, 0
    %v287 = vsel %vm282, %v255, 0
    %v290 = vsel %vm282, %v256, 0
    %v293 = vsel %vm282, %v257, 0
    %295 = vmatprep.subr.mxu0 0.0
    %296 = vmatpush1.msra.mxu0 0.0
    %297 = vmatprep.subr.mxu0 0.0
    %298 = vmatpush1.msra.mxu0 0.0
    %299 = vmatprep.subr.mxu0 0.0
    %300 = vmatpush1.msra.mxu0 0.0
    %301 = vmatprep.subr.mxu0 0.0
    %302 = vmatpush1.msra.mxu0 0.0
    %303 = vmatprep.subr.mxu0 0.0
    %304 = vmatpush1.msra.mxu0 0.0
    %305 = vmatprep.subr.mxu0 0.0
    %306 = vmatpush1.msra.mxu0 0.0
    %307 = vmatprep.subr.mxu0 0.0
    %308 = vmatpush1.msra.mxu0 0.0
    %309 = vmatprep.subr.mxu0 0.0
    %310 = vmatpush1.msra.mxu0 0.0
    %311 = vmatprep.subr.mxu0 0.0
    %312 = vmatpush1.msra.mxu0 0.0
    %313 = vmatprep.subr.mxu0 0.0
    %314 = vmatpush1.msra.mxu0 0.0
    %315 = vmatprep.subr.mxu0 0.0
    %316 = vmatpush1.msra.mxu0 0.0
    %317 = vmatprep.subr.mxu0 0.0
    %318 = vmatpush1.msra.mxu0 0.0
    %319 = vmatprep.subr.mxu0 %v253
    %320 = vmatpush1.msra.mxu0 %v252
    %321 = vmatprep.subr.mxu0 %v251
    %322 = vmatpush1.msra.mxu0 %v250
    %323 = vmatprep.subr.mxu0 %v249
    %324 = vmatpush1.msra.mxu0 %v248
    %325 = vmatprep.subr.mxu0 %v247
    %326 = vmatpush1.msra.mxu0 %v246
    %327 = vmatprep.subr.mxu0 0.0
    %328 = vmatpush2.msra.mxu0 0.0
    %329 = vmatprep.subr.mxu0 0.0
    %330 = vmatpush2.msra.mxu0 0.0
    %331 = vmatprep.subr.mxu0 0.0
    %332 = vmatpush2.msra.mxu0 0.0
    %333 = vmatprep.subr.mxu0 0.0
    %334 = vmatpush2.msra.mxu0 0.0
    %335 = vmatprep.subr.mxu0 0.0
    %336 = vmatpush2.msra.mxu0 0.0
    %337 = vmatprep.subr.mxu0 0.0
    %338 = vmatpush2.msra.mxu0 0.0
    %339 = vmatprep.subr.mxu0 0.0
    %340 = vmatpush2.msra.mxu0 0.0
    %341 = vmatprep.subr.mxu0 0.0
    %342 = vmatpush2.msra.mxu0 0.0
    %343 = vmatprep.subr.mxu0 0.0
    %344 = vmatpush2.msra.mxu0 0.0
    %345 = vmatprep.subr.mxu0 0.0
    %346 = vmatpush2.msra.mxu0 0.0
    %347 = vmatprep.subr.mxu0 0.0
    %348 = vmatpush2.msra.mxu0 0.0
    %349 = vmatprep.subr.mxu0 0.0
    %350 = vmatpush2.msra.mxu0 0.0
    %351 = vmatprep.subr.mxu0 0.0
    %352 = vmatpush2.msra.mxu0 0.0
    %353 = vmatprep.subr.mxu0 0.0
    %354 = vmatpush2.msra.mxu0 0.0
    %355 = vmatprep.subr.mxu0 0.0
    %356 = vmatpush2.msra.mxu0 0.0
    %357 = vmatprep.subr.mxu0 0.0
    %358 = vmatpush2.msra.mxu0 0.0
    %359 = vmatprep.mubr.f32.mxu0 0.0
    %360 = vmatmul.mubr.f32.gmra.mxu0 %v284
    %v361 = vpop.f32.mrf.mxu0
    %v362 = vadd.f32 %v265, %v361
    %v363 = vpop.f32.mrf.mxu0
    %v364 = vadd.f32 %v265, %v363
    %365 = vmatprep.mubr.f32.mxu0 0.0
    %366 = vmatmul.mubr.f32.gmra.mxu0 %v287
    %v367 = vpop.f32.mrf.mxu0
    %v368 = vadd.f32 %v270, %v367
    %v369 = vpop.f32.mrf.mxu0
    %v370 = vadd.f32 %v270, %v369
    %371 = vmatprep.mubr.f32.mxu0 0.0
    %372 = vmatmul.mubr.f32.gmra.mxu0 %v290
    %v373 = vpop.f32.mrf.mxu0
    %v374 = vadd.f32 %v275, %v373
    %v375 = vpop.f32.mrf.mxu0
    %v376 = vadd.f32 %v275, %v375
    %377 = vmatprep.mubr.f32.mxu0 0.0
    %378 = vmatmul.mubr.f32.gmra.mxu0 %v293
    %v379 = vpop.f32.mrf.mxu0
    %v380 = vadd.f32 %v280, %v379
    %v381 = vpop.f32.mrf.mxu0
    %v382 = vadd.f32 %v280, %v381
    %383 = vdwg.mxu0
    %v384 = vmax.f32 %v362, 0.0
    %v385 = vmax.f32 %v364, 0.0
    %v386 = vmax.f32 %v368, 0.0
    %v387 = vmax.f32 %v370, 0.0
    %v388 = vmax.f32 %v374, 0.0
    %v389 = vmax.f32 %v376, 0.0
    %v390 = vmax.f32 %v380, 0.0
    %v391 = vmax.f32 %v382, 0.0
    %v392 = vmul.f32 %v384, %v384
    %v393 = vmul.f32 %v385, %v385
    %v394 = vmul.f32 %v386, %v386
    %v395 = vmul.f32 %v387, %v387
    %v396 = vmul.f32 %v388, %v388
    %v397 = vmul.f32 %v389, %v389
    %v398 = vmul.f32 %v390, %v390
    %v399 = vmul.f32 %v391, %v391
    %v400 = vadd.f32 %v392, %v394
    %v401 = vadd.f32 %v400, %v396
    %v402 = vadd.f32 %v401, %v398
    %v403 = vrot.slane %v402, 4
    %v404 = vadd.f32 %v402, %v403
    %v405 = vrot.slane %v404, 2
    %v406 = vadd.f32 %v404, %v405
    %v407 = vrot.slane %v406, 1
    %v408 = vadd.f32 %v406, %v407
    %v409 = vadd.f32 %v393, %v395
    %v410 = vadd.f32 %v409, %v397
    %v411 = vadd.f32 %v410, %v399
    %v412 = vrot.slane %v411, 4
    %v413 = vadd.f32 %v411, %v412
    %v414 = vrot.slane %v413, 2
    %v415 = vadd.f32 %v413, %v414
    %v416 = vrot.slane %v415, 1
    %v417 = vadd.f32 %v415, %v416
    %v418 = vmul.f32 %v408, 0.03125
    %v419 = vmul.f32 %v417, 0.03125
    %v420 = vadd.f32 %v418, 0.0
    %v421 = vadd.f32 %v419, 0.0
    %v422 = vmax.f32 %v408, 1e-24
    %v423 = vmax.f32 %v417, 1e-24
    %v424 = vrsqrt.pop %v422
    %v425 = vrsqrt.pop %v423
    %v426 = vmul.f32 %v384, %v424
    %v427 = vmul.f32 %v385, %v425
    %v428 = vmul.f32 %v386, %v424
    %v429 = vmul.f32 %v387, %v425
    %v430 = vmul.f32 %v388, %v424
    %v431 = vmul.f32 %v389, %v425
    %v432 = vmul.f32 %v390, %v424
    %v433 = vmul.f32 %v391, %v425
    %v434 = vld [vmem:[#allocation8] sm:$0xff]
    %v435 = vld [vmem:[#allocation8 + $0x8] sm:$0xff]
    %v436 = vld [vmem:[#allocation8 + $0x10] sm:$0xff]
    %v437 = vld [vmem:[#allocation8 + $0x18] sm:$0xff]
    %v438 = vld [vmem:[%s6] sm:$0xff]
    %v439 = vld [vmem:[%s6 + $0x8] sm:$0xff]
    %v440 = vld [vmem:[%s6 + $0x10] sm:$0xff]
    %v441 = vld [vmem:[%s6 + $0x18] sm:$0xff]
    %443 = vset.pattern.permute.xlu0 0
    %444 = vperm.xlu0 %443, %v438
    %v445 = vpop.permute.xlu0 %444
    %448 = vset.pattern.permute.xlu0 0
    %449 = vperm.xlu0 %448, %v439
    %v450 = vpop.permute.xlu0 %449
    %453 = vset.pattern.permute.xlu0 0
    %454 = vperm.xlu0 %453, %v440
    %v455 = vpop.permute.xlu0 %454
    %458 = vset.pattern.permute.xlu0 0
    %459 = vperm.xlu0 %458, %v441
    %v460 = vpop.permute.xlu0 %459
    %v463 = vsel %vm282, %v434, 0
    %v466 = vsel %vm282, %v435, 0
    %v469 = vsel %vm282, %v436, 0
    %v472 = vsel %vm282, %v437, 0
    %474 = vmatprep.subr.mxu0 0.0
    %475 = vmatpush1.msra.mxu0 0.0
    %476 = vmatprep.subr.mxu0 0.0
    %477 = vmatpush1.msra.mxu0 0.0
    %478 = vmatprep.subr.mxu0 0.0
    %479 = vmatpush1.msra.mxu0 0.0
    %480 = vmatprep.subr.mxu0 0.0
    %481 = vmatpush1.msra.mxu0 0.0
    %482 = vmatprep.subr.mxu0 0.0
    %483 = vmatpush1.msra.mxu0 0.0
    %484 = vmatprep.subr.mxu0 0.0
    %485 = vmatpush1.msra.mxu0 0.0
    %486 = vmatprep.subr.mxu0 0.0
    %487 = vmatpush1.msra.mxu0 0.0
    %488 = vmatprep.subr.mxu0 0.0
    %489 = vmatpush1.msra.mxu0 0.0
    %490 = vmatprep.subr.mxu0 0.0
    %491 = vmatpush1.msra.mxu0 0.0
    %492 = vmatprep.subr.mxu0 0.0
    %493 = vmatpush1.msra.mxu0 0.0
    %494 = vmatprep.subr.mxu0 0.0
    %495 = vmatpush1.msra.mxu0 0.0
    %496 = vmatprep.subr.mxu0 0.0
    %497 = vmatpush1.msra.mxu0 0.0
    %498 = vmatprep.subr.mxu0 %v433
    %499 = vmatpush1.msra.mxu0 %v432
    %500 = vmatprep.subr.mxu0 %v431
    %501 = vmatpush1.msra.mxu0 %v430
    %502 = vmatprep.subr.mxu0 %v429
    %503 = vmatpush1.msra.mxu0 %v428
    %504 = vmatprep.subr.mxu0 %v427
    %505 = vmatpush1.msra.mxu0 %v426
    %506 = vmatprep.subr.mxu0 0.0
    %507 = vmatpush2.msra.mxu0 0.0
    %508 = vmatprep.subr.mxu0 0.0
    %509 = vmatpush2.msra.mxu0 0.0
    %510 = vmatprep.subr.mxu0 0.0
    %511 = vmatpush2.msra.mxu0 0.0
    %512 = vmatprep.subr.mxu0 0.0
    %513 = vmatpush2.msra.mxu0 0.0
    %514 = vmatprep.subr.mxu0 0.0
    %515 = vmatpush2.msra.mxu0 0.0
    %516 = vmatprep.subr.mxu0 0.0
    %517 = vmatpush2.msra.mxu0 0.0
    %518 = vmatprep.subr.mxu0 0.0
    %519 = vmatpush2.msra.mxu0 0.0
    %520 = vmatprep.subr.mxu0 0.0
    %521 = vmatpush2.msra.mxu0 0.0
    %522 = vmatprep.subr.mxu0 0.0
    %523 = vmatpush2.msra.mxu0 0.0
    %524 = vmatprep.subr.mxu0 0.0
    %525 = vmatpush2.msra.mxu0 0.0
    %526 = vmatprep.subr.mxu0 0.0
    %527 = vmatpush2.msra.mxu0 0.0
    %528 = vmatprep.subr.mxu0 0.0
    %529 = vmatpush2.msra.mxu0 0.0
    %530 = vmatprep.subr.mxu0 0.0
    %531 = vmatpush2.msra.mxu0 0.0
    %532 = vmatprep.subr.mxu0 0.0
    %533 = vmatpush2.msra.mxu0 0.0
    %534 = vmatprep.subr.mxu0 0.0
    %535 = vmatpush2.msra.mxu0 0.0
    %536 = vmatprep.subr.mxu0 0.0
    %537 = vmatpush2.msra.mxu0 0.0
    %538 = vmatprep.mubr.f32.mxu0 0.0
    %539 = vmatmul.mubr.f32.gmra.mxu0 %v463
    %v540 = vpop.f32.mrf.mxu0
    %v541 = vadd.f32 %v445, %v540
    %v542 = vpop.f32.mrf.mxu0
    %v543 = vadd.f32 %v445, %v542
    %544 = vmatprep.mubr.f32.mxu0 0.0
    %545 = vmatmul.mubr.f32.gmra.mxu0 %v466
    %v546 = vpop.f32.mrf.mxu0
    %v547 = vadd.f32 %v450, %v546
    %v548 = vpop.f32.mrf.mxu0
    %v549 = vadd.f32 %v450, %v548
    %550 = vmatprep.mubr.f32.mxu0 0.0
    %551 = vmatmul.mubr.f32.gmra.mxu0 %v469
    %v552 = vpop.f32.mrf.mxu0
    %v553 = vadd.f32 %v455, %v552
    %v554 = vpop.f32.mrf.mxu0
    %v555 = vadd.f32 %v455, %v554
    %556 = vmatprep.mubr.f32.mxu0 0.0
    %557 = vmatmul.mubr.f32.gmra.mxu0 %v472
    %v558 = vpop.f32.mrf.mxu0
    %v559 = vadd.f32 %v460, %v558
    %v560 = vpop.f32.mrf.mxu0
    %v561 = vadd.f32 %v460, %v560
    %562 = vdwg.mxu0
    %v563 = vmax.f32 %v541, 0.0
    %v564 = vmax.f32 %v543, 0.0
    %v565 = vmax.f32 %v547, 0.0
    %v566 = vmax.f32 %v549, 0.0
    %v567 = vmax.f32 %v553, 0.0
    %v568 = vmax.f32 %v555, 0.0
    %v569 = vmax.f32 %v559, 0.0
    %v570 = vmax.f32 %v561, 0.0
    %v571 = vmul.f32 %v563, %v563
    %v572 = vmul.f32 %v564, %v564
    %v573 = vmul.f32 %v565, %v565
    %v574 = vmul.f32 %v566, %v566
    %v575 = vmul.f32 %v567, %v567
    %v576 = vmul.f32 %v568, %v568
    %v577 = vmul.f32 %v569, %v569
    %v578 = vmul.f32 %v570, %v570
    %v579 = vadd.f32 %v571, %v573
    %v580 = vadd.f32 %v579, %v575
    %v581 = vadd.f32 %v580, %v577
    %v582 = vrot.slane %v581, 4
    %v583 = vadd.f32 %v581, %v582
    %v584 = vrot.slane %v583, 2
    %v585 = vadd.f32 %v583, %v584
    %v586 = vrot.slane %v585, 1
    %v587 = vadd.f32 %v585, %v586
    %v588 = vadd.f32 %v572, %v574
    %v589 = vadd.f32 %v588, %v576
    %v590 = vadd.f32 %v589, %v578
    %v591 = vrot.slane %v590, 4
    %v592 = vadd.f32 %v590, %v591
    %v593 = vrot.slane %v592, 2
    %v594 = vadd.f32 %v592, %v593
    %v595 = vrot.slane %v594, 1
    %v596 = vadd.f32 %v594, %v595
    %v597 = vmul.f32 %v587, 0.03125
    %v598 = vmul.f32 %v596, 0.03125
    %v599 = vadd.f32 %v420, %v597
    %v600 = vadd.f32 %v421, %v598
    %v603 = vcombine.low %v599, %v600
    %v605 = vunpack.c.l.s4 1966171168
    %v606 = vunpack.c.0.s8 %v605
    %v607 = vlaneseq
    %v608 = vshrl.u32 %v607, 7
    %v609 = vsub.s32 %v606, %v608
    %v610 = vrot.slane %v603, %v609
    %v612 = vunpack.c.l.s4 1966171168
    %v613 = vunpack.c.0.s8 %v612
    %v614 = vlaneseq
    %v615 = vshrl.u32 %v614, 7
    %v616 = vsub.s32 %v613, %v615
    %v617 = vrot.slane %v610, %v616
    %v619 = vlaneseq
    %vm620 = vcmp.ge.s32.totalorder %v619, 0
    %vm621 = vcmp.lt.s32.totalorder %v619, 256
    %vm622 = vmand %vm620, %vm621
    %623 = vst.msk [vmem:[#allocation10] sm:$0x3] %vm622, %v617
    // Predicated region
    $region46: #{tpu_custom_call.1} parent=1 // pred_check
      _
    $region47: #{tpu_custom_call.1} parent=1 // pred_check_branch
      %625 = sbr.rel (0) target = $region49
    $region48: #{tpu_custom_call.1} parent=1 // pred_region
      %s627 = ssub.s32 32, 32
      %628 = vsyncadd [#allocation4], %s627
      %s630 = sshll.u32 [#allocation10], 4
      %s631 = int_to_ptr.vmem [resolvable:$true] %s630
      %633 = dma.vmem_to_hbm [thread:$0]  %s631, 32, %s7, [#allocation4]
    $region49: #{tpu_custom_call.1} parent=1 // pred_fallthru
      _
    // Predicated region
    $region50: #{tpu_custom_call.1} parent=1 // pred_check
      _
    $region51: #{tpu_custom_call.1} parent=1 // pred_check_branch
      %635 = sbr.rel (0) target = $region53
    $region52: #{tpu_custom_call.1} parent=1 // pred_region
      %636 = dma.done [#allocation4], 32
    $region53: #{tpu_custom_call.1} parent=1 // pred_fallthru
      _
    %637 = vsyncpa [#allocation3], 1
    %638 = vsyncpa [#allocation6], 1
    %639 = vsyncpa [#allocation9], 1
    %640 = vsyncpa [#allocation4], 1

</llo_original>
